<compile_context>
chip_gen: v7x
topology: tpu7x:2x2x1
jax: 0.10.0
libtpu: 0.0.40
codegen_flags: <defaults>
</compile_context>

<pallas_src>
import functools

import jax
import jax.numpy as jnp
from jax import lax
from jax.experimental import pallas as pl
from jax.experimental.pallas import tpu as pltpu


def _round_up(x, m):
    return ((x + m - 1) // m) * m


def _compute_logits(x1, x2, w, t, tile_n, num_tiles, n_valid):
    """Lane-dense bilinear logits s[0, n] = x1[n] . W . x2[n] for one tile."""
    # tmp[n, i] = sum_j x2[n, j] * W[i, j]   (== x2 @ W^T, no transpose emitted)
    tmp = lax.dot_general(
        x2, w, dimension_numbers=(((1,), (1,)), ((), ())),
        preferred_element_type=jnp.float32)                      # (tile_n, E)
    z = x1.astype(jnp.float32) * tmp                             # (tile_n, E)
    # Row-sum via the MXU so the logits land lane-dense: s[0, n] = sum_i z[n, i]
    ones_row = jnp.ones((1, z.shape[1]), jnp.float32)
    s = lax.dot_general(
        ones_row, z, dimension_numbers=(((1,), (1,)), ((), ())),
        preferred_element_type=jnp.float32)                      # (1, tile_n)
    # nn.Bilinear's scalar bias is intentionally omitted: Softmax(dim=0) is
    # shift-invariant, so a constant added to every logit cannot change it.
    if tile_n * num_tiles != n_valid:
        col = lax.broadcasted_iota(jnp.int32, (1, tile_n), 1)
        gid = t * tile_n + col
        s = jnp.where(gid < n_valid, s, -jnp.inf)
    return s


def _attention_kernel_cached(n_valid, tile_n, num_tiles,
                             x1_ref, x2_ref, w_ref, o_ref,
                             m_ref, l_ref, logits_ref):
    # x1_ref, x2_ref: (tile_n, E); w_ref: (E, E); o_ref: (1, tile_n)
    # m_ref, l_ref:   (1, 1)  running max / running sum-of-exp
    # logits_ref:     (num_tiles, 1, tile_n) cached pass-0 logits
    p = pl.program_id(0)   # 0 = statistics pass, 1 = normalize/write pass
    t = pl.program_id(1)   # tile index along the node axis N

    @pl.when((p == 0) & (t == 0))
    def _init():
        m_ref[...] = jnp.full_like(m_ref, -jnp.inf)
        l_ref[...] = jnp.zeros_like(l_ref)

    @pl.when(p == 0)
    def _stats():
        s = _compute_logits(x1_ref[...], x2_ref[...], w_ref[...],
                            t, tile_n, num_tiles, n_valid)
        logits_ref[t] = s                                        # cache in VMEM
        # Streaming-softmax update.  Every tile contains >= 1 valid row by
        # construction of n_pad, so m_new is always finite (no NaN from
        # exp(m_run - m_new)).
        m_run = m_ref[...]
        m_new = jnp.maximum(m_run, jnp.max(s, axis=1, keepdims=True))
        l_ref[...] = (l_ref[...] * jnp.exp(m_run - m_new)
                      + jnp.sum(jnp.exp(s - m_new), axis=1, keepdims=True))
        m_ref[...] = m_new

    @pl.when(p == 1)
    def _write():
        s = logits_ref[t]                                        # (1, tile_n)
        e = jnp.exp(s - m_ref[...])
        o_ref[...] = (e * pl.reciprocal(l_ref[...], approx=False)).astype(o_ref.dtype)


def _attention_kernel_recompute(n_valid, tile_n, num_tiles,
                                x1_ref, x2_ref, w_ref, o_ref, m_ref, l_ref):
    # Fallback for N too large to cache the logits in VMEM: pass 1 re-reads the
    # inputs and recomputes the tile logits.
    p = pl.program_id(0)
    t = pl.program_id(1)

    @pl.when((p == 0) & (t == 0))
    def _init():
        m_ref[...] = jnp.full_like(m_ref, -jnp.inf)
        l_ref[...] = jnp.zeros_like(l_ref)

    s = _compute_logits(x1_ref[...], x2_ref[...], w_ref[...],
                        t, tile_n, num_tiles, n_valid)

    @pl.when(p == 0)
    def _stats():
        m_run = m_ref[...]
        m_new = jnp.maximum(m_run, jnp.max(s, axis=1, keepdims=True))
        l_ref[...] = (l_ref[...] * jnp.exp(m_run - m_new)
                      + jnp.sum(jnp.exp(s - m_new), axis=1, keepdims=True))
        m_ref[...] = m_new

    @pl.when(p == 1)
    def _write():
        e = jnp.exp(s - m_ref[...])
        o_ref[...] = (e * pl.reciprocal(l_ref[...], approx=False)).astype(o_ref.dtype)


def attention_forward(node1, node2, weight, bias=None, *, tile_n=None,
                      stream_dtype=None, cache_logits=None):
    """Pallas TPU forward of Softmax(dim=0)(Bilinear(E, E, 1)(node1, node2)).

    node1, node2: (N, E); weight: (1, E, E) or (E, E); bias is ignored because
    Softmax over dim 0 is shift-invariant.  Returns (N, 1) float32.
    """
    del bias  # mathematically a no-op on Softmax(dim=0) output
    node1 = jnp.asarray(node1)
    node2 = jnp.asarray(node2)
    N, E = node1.shape
    assert node2.shape == (N, E)
    weight = jnp.asarray(weight).reshape(E, E).astype(jnp.float32)

    if stream_dtype is not None:
        # Halve HBM traffic of the dominant streams; f32 accumulation is kept
        # inside the kernel via preferred_element_type / explicit casts.
        node1 = node1.astype(stream_dtype)
        node2 = node2.astype(stream_dtype)
        weight = weight.astype(stream_dtype)
    in_bytes = jnp.dtype(node1.dtype).itemsize

    # ---- VMEM budget, derived from the actual chip (v7x: 64 MiB, v5e/v6e:
    #      128 MiB physical).  Conservative 3/4 cap keeps double-buffering
    #      alive and avoids compile-time VMEM OOM on v7x. ----
    try:
        vmem_cap = int(pltpu.get_tpu_info().vmem_capacity_bytes)
    except Exception:
        vmem_cap = 64 * 1024 * 1024          # safe fallback (v7x-sized)
    vmem_limit = int(min(vmem_cap * 3 // 4, 100 * 1024 * 1024))

    weight_bytes = 2 * E * E * 4             # double-buffered resident weight
    # Cached logits scratch is (num_tiles, 1, tile_n) f32, 8-sublane padded
    # -> ~32 bytes per node row.
    logits_bytes = 32 * _round_up(max(N, 1), 128)
    if cache_logits is None:
        cache_logits = (weight_bytes + logits_bytes) <= vmem_limit // 3

    # ---- Tile size: as large as the streaming budget allows (per-grid-step
    #      overhead dominates small tiles), lane-aligned to 128. ----
    if tile_n is None:
        budget = vmem_limit - weight_bytes - (logits_bytes if cache_logits else 0)
        budget -= 4 * 1024 * 1024            # output blocks, scratch, slack
        per_row = 2 * 2 * E * in_bytes       # 2 streamed inputs x 2 buffers
        tile_n = max(128, budget // max(per_row, 1))
        tile_n = int(min(tile_n, 8192, _round_up(N, 128)))
    tile_n = int(tile_n)

    if tile_n >= N:
        tile_n = _round_up(N, 8)             # single tile covers everything
    else:
        tile_n = max(128, (tile_n // 128) * 128)   # lane-aligned output blocks
    n_pad = _round_up(N, tile_n)
    num_tiles = n_pad // tile_n

    if n_pad != N:
        node1 = jnp.pad(node1, ((0, n_pad - N), (0, 0)))
        node2 = jnp.pad(node2, ((0, n_pad - N), (0, 0)))

    scratch_shapes = [pltpu.VMEM((1, 1), jnp.float32),   # running max
                      pltpu.VMEM((1, 1), jnp.float32)]   # running sum of exp
    if cache_logits:
        kernel = functools.partial(_attention_kernel_cached, N, tile_n, num_tiles)
        scratch_shapes.append(pltpu.VMEM((num_tiles, 1, tile_n), jnp.float32))
        # Pass 1 only reads the VMEM logits cache -> pin the streamed inputs
        # to block 0 so no fresh input DMA is issued in the second pass.
        in_idx = lambda p, t: (t * (1 - p), 0)
    else:
        kernel = functools.partial(_attention_kernel_recompute, N, tile_n, num_tiles)
        in_idx = lambda p, t: (t, 0)

    out_row = pl.pallas_call(
        kernel,
        out_shape=jax.ShapeDtypeStruct((1, n_pad), jnp.float32),
        grid_spec=pltpu.PrefetchScalarGridSpec(
            num_scalar_prefetch=0,
            grid=(2, num_tiles),                     # (pass, N-tile), tile innermost
            in_specs=[
                pl.BlockSpec((tile_n, E), in_idx),           # node1 tile
                pl.BlockSpec((tile_n, E), in_idx),           # node2 tile
                pl.BlockSpec((E, E), lambda p, t: (0, 0)),   # weight (resident)
            ],
            out_specs=pl.BlockSpec((1, tile_n), lambda p, t: (0, t)),  # lane-dense
            scratch_shapes=scratch_shapes,
        ),
        compiler_params=pltpu.CompilerParams(
            # Both axes carry sequential dependencies through the shared (m, l)
            # softmax statistics; single-TensorCore schedule (portable).
            dimension_semantics=("arbitrary", "arbitrary"),
            vmem_limit_bytes=vmem_limit,
        ),
    )(node1, node2, weight)

    return out_row[0, :N].reshape(N, 1)


def _reference(node1, node2, weight, bias):
    # Pure-JAX reference mirroring torch.nn.Bilinear + Softmax(0).
    E = node1.shape[1]
    w = jnp.asarray(weight).reshape(E, E)
    s = jnp.einsum("ni,ij,nj->n", node1, w, node2,
                   precision=lax.Precision.HIGHEST)[:, None] + jnp.asarray(bias).reshape(())
    return jax.nn.softmax(s, axis=0)


if __name__ == "__main__":
    key = jax.random.PRNGKey(0)
    k1, k2, kw, kb = jax.random.split(key, 4)

    # Small case implied by the module: N=8 node pairs, embedding_dims E=32.
    N, E = 8, 32
    node1 = jax.random.normal(k1, (N, E), dtype=jnp.float32)
    node2 = jax.random.normal(k2, (N, E), dtype=jnp.float32)

    # PyTorch Bilinear default init: U(-1/sqrt(in1), 1/sqrt(in1)).
    bound = 1.0 / jnp.sqrt(jnp.float32(E))
    weight = jax.random.uniform(kw, (1, E, E), jnp.float32, -bound, bound)
    bias = jax.random.uniform(kb, (1,), jnp.float32, -bound, bound)

    out = jax.block_until_ready(attention_forward(node1, node2, weight, bias))
    ref = _reference(node1, node2, weight, bias)
    assert out.shape == (N, 1)
    assert jnp.allclose(out, ref, atol=1e-5, rtol=1e-5), (out, ref)
    assert jnp.allclose(jnp.sum(out), 1.0, atol=1e-5)

    # Multi-tile case: padding/masking + streaming two-pass softmax with the
    # VMEM logits cache (pass 1 does no input DMA and no recompute).
    N2 = 300
    kk1, kk2 = jax.random.split(jax.random.PRNGKey(1))
    n1b = jax.random.normal(kk1, (N2, E), dtype=jnp.float32)
    n2b = jax.random.normal(kk2, (N2, E), dtype=jnp.float32)
    ref2 = _reference(n1b, n2b, weight, bias)

    out2 = jax.block_until_ready(
        attention_forward(n1b, n2b, weight, bias, tile_n=128))
    assert out2.shape == (N2, 1)
    assert jnp.allclose(out2, ref2, atol=1e-5, rtol=1e-5)
    assert jnp.allclose(jnp.sum(out2), 1.0, atol=1e-4)

    # Recompute fallback path (used automatically when N is too large for the
    # VMEM logits cache) — exercised explicitly here.
    out3 = jax.block_until_ready(
        attention_forward(n1b, n2b, weight, bias, tile_n=128, cache_logits=False))
    assert jnp.allclose(out3, ref2, atol=1e-5, rtol=1e-5)

    # bf16 streaming path: halves dominant HBM traffic on this memory-bound
    # kernel; f32 accumulation keeps the softmax well-behaved.
    out4 = jax.block_until_ready(
        attention_forward(n1b, n2b, weight, bias, tile_n=128,
                          stream_dtype=jnp.bfloat16))
    assert out4.shape == (N2, 1)
    assert jnp.max(jnp.abs(out4 - ref2)) < 5e-2
    assert jnp.allclose(jnp.sum(out4), 1.0, atol=1e-3)

    print("KERNEL_OK")
</pallas_src>

<mosaic_0001>
module attributes {stable_mosaic.version = 11 : i64} {
  func.func @_attention_kernel_cached(%arg0: i32, %arg1: i32, %arg2: memref<8x32xf32, #tpu.memory_space<vmem>>, %arg3: memref<8x32xf32, #tpu.memory_space<vmem>>, %arg4: memref<32x32xf32, #tpu.memory_space<vmem>>, %arg5: memref<1x8xf32, #tpu.memory_space<vmem>>, %arg6: memref<1x1xf32, #tpu.memory_space<vmem>>, %arg7: memref<1x1xf32, #tpu.memory_space<vmem>>, %arg8: memref<1x1x8xf32, #tpu.memory_space<vmem>>) attributes {dimension_semantics = [#tpu.dimension_semantics<arbitrary>, #tpu.dimension_semantics<arbitrary>], iteration_bounds = array<i64: 2, 1>, scalar_prefetch = 0 : i64, scratch_operands = 3 : i64, tpu.core_type = #tpu.core_type<tc>, window_params = [{transform_indices = @transform_0, window_bounds = array<i64: 8, 32>}, {transform_indices = @transform_1, window_bounds = array<i64: 8, 32>}, {pipeline_mode = #tpu.pipeline_mode<synchronous>, transform_indices = @transform_2, window_bounds = array<i64: 32, 32>}, {transform_indices = @transform_3, window_bounds = array<i64: 1, 8>}]} {
    %c0_i32 = arith.constant 0 : i32
    %0 = arith.cmpi eq, %arg0, %c0_i32 : i32
    %c0_i32_0 = arith.constant 0 : i32
    %1 = arith.cmpi eq, %arg1, %c0_i32_0 : i32
    %2 = arith.andi %0, %1 : i1
    %3 = arith.extui %2 : i1 to i32
    %c0_i32_1 = arith.constant 0 : i32
    %4 = arith.cmpi ne, %3, %c0_i32_1 : i32
    scf.if %4 {
      %cst = arith.constant 0xFF800000 : f32
      %11 = vector.broadcast %cst : f32 to vector<1x1xf32>
      %c0 = arith.constant 0 : index
      %c0_5 = arith.constant 0 : index
      %12 = vector.load %arg6[%c0, %c0_5] : memref<1x1xf32, #tpu.memory_space<vmem>>, vector<1x1xf32>
      tpu.vector_store %arg6[%c0, %c0_5], %11 {strides = array<i32>} : memref<1x1xf32, #tpu.memory_space<vmem>>, vector<1x1xf32>,
      %cst_6 = arith.constant 0.000000e+00 : f32
      %13 = vector.broadcast %cst_6 : f32 to vector<1x1xf32>
      %c0_7 = arith.constant 0 : index
      %c0_8 = arith.constant 0 : index
      %14 = vector.load %arg7[%c0_7, %c0_8] : memref<1x1xf32, #tpu.memory_space<vmem>>, vector<1x1xf32>
      tpu.vector_store %arg7[%c0_7, %c0_8], %13 {strides = array<i32>} : memref<1x1xf32, #tpu.memory_space<vmem>>, vector<1x1xf32>,
    } else {
    }
    %c0_i32_2 = arith.constant 0 : i32
    %5 = arith.cmpi eq, %arg0, %c0_i32_2 : i32
    %6 = arith.extui %5 : i1 to i32
    %c0_i32_3 = arith.constant 0 : i32
    %7 = arith.cmpi ne, %6, %c0_i32_3 : i32
    scf.if %7 {
      %c0 = arith.constant 0 : index
      %c0_5 = arith.constant 0 : index
      %11 = vector.load %arg2[%c0, %c0_5] : memref<8x32xf32, #tpu.memory_space<vmem>>, vector<8x32xf32>
      %c0_6 = arith.constant 0 : index
      %c0_7 = arith.constant 0 : index
      %12 = vector.load %arg3[%c0_6, %c0_7] : memref<8x32xf32, #tpu.memory_space<vmem>>, vector<8x32xf32>
      %c0_8 = arith.constant 0 : index
      %c0_9 = arith.constant 0 : index
      %13 = vector.load %arg4[%c0_8, %c0_9] : memref<32x32xf32, #tpu.memory_space<vmem>>, vector<32x32xf32>
      %cst = arith.constant dense<0.000000e+00> : vector<8x32xf32>
      %14 = tpu.matmul %12, %13, %cst {dimension_numbers = #tpu.dot_dimension_numbers<[1], [1], [0], [0], [0, 0, 1, 0], [], []>} : vector<8x32xf32>, vector<32x32xf32>, vector<8x32xf32> -> vector<8x32xf32>
      %15 = arith.mulf %11, %14 : vector<8x32xf32>
      %cst_10 = arith.constant 1.000000e+00 : f32
      %16 = vector.broadcast %cst_10 : f32 to vector<1x32xf32>
      %cst_11 = arith.constant dense<0.000000e+00> : vector<1x8xf32>
      %17 = tpu.matmul %16, %15, %cst_11 {dimension_numbers = #tpu.dot_dimension_numbers<[1], [1], [0], [0], [0, 0, 1, 0], [], []>} : vector<1x32xf32>, vector<8x32xf32>, vector<1x8xf32> -> vector<1x8xf32>
      %18 = arith.index_cast %arg1 : i32 to index
      %c0_12 = arith.constant 0 : index
      %c0_13 = arith.constant 0 : index
      %19 = vector.load %arg8[%18, %c0_12, %c0_13] : memref<1x1x8xf32, #tpu.memory_space<vmem>>, vector<1x1x8xf32>
      %20 = vector.shape_cast %19 : vector<1x1x8xf32> to vector<1x8xf32>
      %21 = vector.shape_cast %17 : vector<1x8xf32> to vector<1x1x8xf32>
      tpu.vector_store %arg8[%18, %c0_12, %c0_13], %21 {strides = array<i32>} : memref<1x1x8xf32, #tpu.memory_space<vmem>>, vector<1x1x8xf32>,
      %c0_14 = arith.constant 0 : index
      %c0_15 = arith.constant 0 : index
      %22 = vector.load %arg6[%c0_14, %c0_15] : memref<1x1xf32, #tpu.memory_space<vmem>>, vector<1x1xf32>
      %cst_16 = arith.constant dense<0xFF800000> : vector<1xf32>
      %23 = vector.multi_reduction <maximumf>, %17, %cst_16 [1] : vector<1x8xf32> to vector<1xf32>
      %24 = vector.shape_cast %23 : vector<1xf32> to vector<1x1xf32>
      %25 = arith.maximumf %22, %24 : vector<1x1xf32>
      %c0_17 = arith.constant 0 : index
      %c0_18 = arith.constant 0 : index
      %26 = vector.load %arg7[%c0_17, %c0_18] : memref<1x1xf32, #tpu.memory_space<vmem>>, vector<1x1xf32>
      %27 = arith.subf %22, %25 : vector<1x1xf32>
      %28 = math.exp %27 : vector<1x1xf32>
      %29 = arith.mulf %26, %28 : vector<1x1xf32>
      %30 = vector.broadcast %25 : vector<1x1xf32> to vector<1x8xf32>
      %31 = arith.subf %17, %30 : vector<1x8xf32>
      %32 = math.exp %31 : vector<1x8xf32>
      %cst_19 = arith.constant dense<0.000000e+00> : vector<1xf32>
      %33 = vector.multi_reduction <add>, %32, %cst_19 [1] : vector<1x8xf32> to vector<1xf32>
      %34 = vector.shape_cast %33 : vector<1xf32> to vector<1x1xf32>
      %35 = arith.addf %29, %34 : vector<1x1xf32>
      %c0_20 = arith.constant 0 : index
      %c0_21 = arith.constant 0 : index
      %36 = vector.load %arg7[%c0_20, %c0_21] : memref<1x1xf32, #tpu.memory_space<vmem>>, vector<1x1xf32>
      tpu.vector_store %arg7[%c0_20, %c0_21], %35 {strides = array<i32>} : memref<1x1xf32, #tpu.memory_space<vmem>>, vector<1x1xf32>,
      %c0_22 = arith.constant 0 : index
      %c0_23 = arith.constant 0 : index
      %37 = vector.load %arg6[%c0_22, %c0_23] : memref<1x1xf32, #tpu.memory_space<vmem>>, vector<1x1xf32>
      tpu.vector_store %arg6[%c0_22, %c0_23], %25 {strides = array<i32>} : memref<1x1xf32, #tpu.memory_space<vmem>>, vector<1x1xf32>,
    } else {
    }
    %c1_i32 = arith.constant 1 : i32
    %8 = arith.cmpi eq, %arg0, %c1_i32 : i32
    %9 = arith.extui %8 : i1 to i32
    %c0_i32_4 = arith.constant 0 : i32
    %10 = arith.cmpi ne, %9, %c0_i32_4 : i32
    scf.if %10 {
      %11 = arith.index_cast %arg1 : i32 to index
      %c0 = arith.constant 0 : index
      %c0_5 = arith.constant 0 : index
      %12 = vector.load %arg8[%11, %c0, %c0_5] : memref<1x1x8xf32, #tpu.memory_space<vmem>>, vector<1x1x8xf32>
      %13 = vector.shape_cast %12 : vector<1x1x8xf32> to vector<1x8xf32>
      %c0_6 = arith.constant 0 : index
      %c0_7 = arith.constant 0 : index
      %14 = vector.load %arg6[%c0_6, %c0_7] : memref<1x1xf32, #tpu.memory_space<vmem>>, vector<1x1xf32>
      %15 = vector.broadcast %14 : vector<1x1xf32> to vector<1x8xf32>
      %16 = arith.subf %13, %15 : vector<1x8xf32>
      %17 = math.exp %16 : vector<1x8xf32>
      %c0_8 = arith.constant 0 : index
      %c0_9 = arith.constant 0 : index
      %18 = vector.load %arg7[%c0_8, %c0_9] : memref<1x1xf32, #tpu.memory_space<vmem>>, vector<1x1xf32>
      %19 = tpu.reciprocal %18 : vector<1x1xf32> -> vector<1x1xf32>
      %20 = vector.broadcast %19 : vector<1x1xf32> to vector<1x8xf32>
      %21 = arith.mulf %17, %20 : vector<1x8xf32>
      %c0_10 = arith.constant 0 : index
      %c0_11 = arith.constant 0 : index
      %22 = vector.load %arg5[%c0_10, %c0_11] : memref<1x8xf32, #tpu.memory_space<vmem>>, vector<1x8xf32>
      tpu.vector_store %arg5[%c0_10, %c0_11], %21 {strides = array<i32>} : memref<1x8xf32, #tpu.memory_space<vmem>>, vector<1x8xf32>,
    } else {
    }
    return
  }
  func.func @transform_0(%arg0: i32, %arg1: i32) -> (i32, i32) {
    %c1_i32 = arith.constant 1 : i32
    %0 = arith.subi %c1_i32, %arg0 : i32
    %1 = arith.muli %arg1, %0 : i32
    %c0_i32 = arith.constant 0 : i32
    %c0_i32_0 = arith.constant 0 : i32
    return %1, %c0_i32 : i32, i32
  }
  func.func @transform_1(%arg0: i32, %arg1: i32) -> (i32, i32) {
    %c1_i32 = arith.constant 1 : i32
    %0 = arith.subi %c1_i32, %arg0 : i32
    %1 = arith.muli %arg1, %0 : i32
    %c0_i32 = arith.constant 0 : i32
    %c0_i32_0 = arith.constant 0 : i32
    return %1, %c0_i32 : i32, i32
  }
  func.func @transform_2(%arg0: i32, %arg1: i32) -> (i32, i32) {
    %c0_i32 = arith.constant 0 : i32
    %c0_i32_0 = arith.constant 0 : i32
    %c0_i32_1 = arith.constant 0 : i32
    return %c0_i32, %c0_i32_0 : i32, i32
  }
  func.func @transform_3(%arg0: i32, %arg1: i32) -> (i32, i32) {
    %c0_i32 = arith.constant 0 : i32
    %c0_i32_0 = arith.constant 0 : i32
    return %c0_i32, %arg1 : i32, i32
  }
}

</mosaic_0001>

<llo_original>
// kernel: tpu_custom_call.1
$region0: #{tpu_custom_call.1}
  #allocation0 [shape = 'u32[]', space=smem, size = 0x4, offset = 0x4, fixed_abs, tag = 'smem constant byte address 0x4 - core index']
  #allocation1 [shape = 'u32[144,128]{1,0:T(1,128)}', space=vmem, size = 0x12000, scoped, tag = 'internal scratch']
  #allocation2 [shape = 'f32[1,1]{1,0:T(1,128)}', space=vmem, size = 0x200, scoped, tag = 'scratch operand']
  #allocation3 [shape = 'f32[1,1]{1,0:T(1,128)}', space=vmem, size = 0x200, scoped, tag = 'scratch operand']
  #allocation4 [shape = 'f32[1,1,8]{2,1,0:T(1,128)}', space=vmem, size = 0x200, scoped, tag = 'scratch operand']
  %s0 = inlined_call_operand.hbm [shape: f32[8,32], index: 0, kind: input, shape index: {}]
  %s1 = inlined_call_operand.hbm [shape: f32[8,32], index: 1, kind: input, shape index: {}]
  %s2 = inlined_call_operand.hbm [shape: f32[32,32], index: 2, kind: input, shape index: {}]
  %s3 = inlined_call_operand.hbm [shape: f32[1,8], index: 3, kind: output, shape index: {}]
  %s4 = sld [smem:[#allocation0]]
  $region69: #{tpu_custom_call.1} parent=0
    _
  %s6 = ssub.s32 1, %s4
  %s7 = scalar_select 0, %s6, %s4
  $region1: #{tpu_custom_call.1} parent=0
    #allocation5 [shape = 'u8[8192]{0}', space=vmem, size = 0x2000, scoped, tag = 'input window, operand 0']
    #allocation6 [shape = 's32[2]{0}', space=sflag, size = 0x8, scoped, tag = 'scoped memory for tpu_custom_call.1']
    #allocation7 [shape = 's32[2]{0}', space=sflag, size = 0x8, scoped, tag = 'scoped memory for tpu_custom_call.1']
    #allocation8 [shape = 'u8[8192]{0}', space=vmem, size = 0x2000, scoped, tag = 'input window, operand 1']
    #allocation9 [shape = 's32[2]{0}', space=sflag, size = 0x8, scoped, tag = 'scoped memory for tpu_custom_call.1']
    #allocation10 [shape = 'u8[16384]{0}', space=vmem, size = 0x4000, scoped, tag = 'input window, operand 2, single buffered']
    #allocation11 [shape = 'u8[512]{0}', space=vmem, size = 0x400, scoped, tag = 'output window, operand 0, single buffered']
    %8 = vsyncpa [#allocation6], 0
    %s9 = scalar_lea.sflag [#allocation6], 1
    %10 = vsyncpa %s9, 0
    %11 = vsyncpa [#allocation9], 0
    %s12 = scalar_lea.sflag [#allocation9], 1
    %13 = vsyncpa %s12, 0
    %14 = vsyncpa [#allocation7], 0
    loop: start=0, step=1, limit=4
    $region2: #{tpu_custom_call.1} parent=1 // loop_pre_header
      _
    $region3: #{tpu_custom_call.1} parent=1 // loop_header
      %s16 = sphi 0, %s20
      %p17 = scmp.ge.s32.totalorder %s16, 4
      %s23 = sphi 0, %s35
      %s24 = sphi 0, %s31
      %s25 = sphi 0, %s23
      %s26 = sphi 0, %s24
      %s27 = sphi 0, %s25
      %s28 = sphi 0, %s26
      %s42 = sphi 0, %s44
      %s45 = sphi 0, %s42
      %s46 = sphi 0, %s45
      %s62 = sphi 0, %s46
      %s72 = sphi 0, %s74
      %s75 = sphi 0, %s72
      %s76 = sphi 0, %s75
      %s92 = sphi 0, %s76
      %s96 = sphi 0, %s96
      %s98 = sphi 0, %s96
      %s99 = sphi 0, %s98
      %s113 = sphi 0, %s99
      %s119 = sphi 0, %s121
      %s122 = sphi 0, %s119
      %s123 = sphi 0, %s122
      %s139 = sphi 0, %s123
    $region4: #{tpu_custom_call.1} parent=1 // loop_header_branch
      %19 = sbr.rel (%p17) target = $region8
    $region5: #{tpu_custom_call.1} parent=1 // loop_body
      %s21 = ssub.s32 %s16, 1
      %s22 = ssub.s32 %s16, 2
      %s29 = sadd.s32 1, %s24
      %p30 = scmp.ge.s32.totalorder %s29, 1
      %s31 = scalar_select %p30, 0, %s29
      %s32 = sadd.s32 1, %s23
      %s33 = scalar_select %p30, %s32, %s23
      %p34 = scmp.ge.s32.totalorder %s33, 2
      %s35 = scalar_select %p34, 0, %s33
      %s36 = ssub.s32 1, %s23
      %s37 = smul.u32 %s24, %s36
      %s38 = ssub.s32 1, %s35
      %s39 = smul.u32 %s31, %s38
      %s40 = ssub.s32 %s37, %s39
      %p41 = scmp.eq.s32.totalorder %s40, 0
      %s43 = sadd.s32 %s42, 1
      %s44 = scalar_select %p41, %s42, %s43
      %p47 = pneg %p41
      %p48 = scmp.eq.s32.totalorder %s16, 1
      %p49 = por %p47, %p48
      %p50 = scmp.ne.s32.totalorder %s42, %s45
      %p51 = scmp.eq.s32.totalorder %s16, 0
      %p52 = por %p50, %p51
      %p53 = scmp.ne.s32.totalorder %s42, %s45
      %p54 = scmp.eq.s32.totalorder %s21, 1
      %p55 = por %p53, %p54
      %p56 = scmp.ne.s32.totalorder %s45, %s46
      %p57 = scmp.eq.s32.totalorder %s21, 0
      %p58 = por %p56, %p57
      %p59 = scmp.ne.s32.totalorder %s45, %s46
      %p60 = scmp.eq.s32.totalorder %s22, 1
      %p61 = por %p59, %p60
      %p63 = scmp.ne.s32.totalorder %s46, %s62
      %p64 = scmp.eq.s32.totalorder %s22, 0
      %p65 = por %p63, %p64
      %s66 = ssub.s32 1, %s23
      %s67 = smul.u32 %s24, %s66
      %s68 = ssub.s32 1, %s35
      %s69 = smul.u32 %s31, %s68
      %s70 = ssub.s32 %s67, %s69
      %p71 = scmp.eq.s32.totalorder %s70, 0
      %s73 = sadd.s32 %s72, 1
      %s74 = scalar_select %p71, %s72, %s73
      %p77 = pneg %p71
      %p78 = scmp.eq.s32.totalorder %s16, 1
      %p79 = por %p77, %p78
      %p80 = scmp.ne.s32.totalorder %s72, %s75
      %p81 = scmp.eq.s32.totalorder %s16, 0
      %p82 = por %p80, %p81
      %p83 = scmp.ne.s32.totalorder %s72, %s75
      %p84 = scmp.eq.s32.totalorder %s21, 1
      %p85 = por %p83, %p84
      %p86 = scmp.ne.s32.totalorder %s75, %s76
      %p87 = scmp.eq.s32.totalorder %s21, 0
      %p88 = por %p86, %p87
      %p89 = scmp.ne.s32.totalorder %s75, %s76
      %p90 = scmp.eq.s32.totalorder %s22, 1
      %p91 = por %p89, %p90
      %p93 = scmp.ne.s32.totalorder %s76, %s92
      %p94 = scmp.eq.s32.totalorder %s22, 0
      %p95 = por %p93, %p94
      %s97 = sadd.s32 %s96, 1
      %p100 = scmp.eq.s32.totalorder %s16, 1
      %p101 = scmp.ne.s32.totalorder %s96, %s98
      %p102 = scmp.eq.s32.totalorder %s16, 0
      %p103 = por %p101, %p102
      %p104 = scmp.ne.s32.totalorder %s96, %s98
      %p105 = scmp.eq.s32.totalorder %s21, 1
      %p106 = por %p104, %p105
      %p107 = scmp.ne.s32.totalorder %s98, %s99
      %p108 = scmp.eq.s32.totalorder %s21, 0
      %p109 = por %p107, %p108
      %p110 = scmp.ne.s32.totalorder %s98, %s99
      %p111 = scmp.eq.s32.totalorder %s22, 1
      %p112 = por %p110, %p111
      %p114 = scmp.ne.s32.totalorder %s99, %s113
      %p115 = scmp.eq.s32.totalorder %s22, 0
      %p116 = por %p114, %p115
      %s117 = ssub.s32 %s24, %s31
      %p118 = scmp.eq.s32.totalorder %s117, 0
      %s120 = sadd.s32 %s119, 1
      %s121 = scalar_select %p118, %s119, %s120
      %p124 = pneg %p118
      %p125 = scmp.eq.s32.totalorder %s16, 1
      %p126 = por %p124, %p125
      %p127 = scmp.ne.s32.totalorder %s119, %s122
      %p128 = scmp.eq.s32.totalorder %s16, 0
      %p129 = por %p127, %p128
      %p130 = scmp.ne.s32.totalorder %s119, %s122
      %p131 = scmp.eq.s32.totalorder %s21, 1
      %p132 = por %p130, %p131
      %p133 = scmp.ne.s32.totalorder %s122, %s123
      %p134 = scmp.eq.s32.totalorder %s21, 0
      %p135 = por %p133, %p134
      %p136 = scmp.ne.s32.totalorder %s122, %s123
      %p137 = scmp.eq.s32.totalorder %s22, 1
      %p138 = por %p136, %p137
      %p140 = scmp.ne.s32.totalorder %s123, %s139
      %p141 = scmp.eq.s32.totalorder %s22, 0
      %p142 = por %p140, %p141
      %p143 = scmp.le.s32.totalorder 1, %s16
      %p144 = scmp.lt.s32.totalorder %s16, 3
      %p145 = pnand %p143, %p144
      %p146 = pneg %p145
      // Predicated region
      $region9: #{tpu_custom_call.1} parent=5 // pred_check
        _
      $region10: #{tpu_custom_call.1} parent=5 // pred_check_branch
        %148 = sbr.rel (%p145) target = $region12
      $region11: #{tpu_custom_call.1} parent=5 // pred_region
        %s149 = ssub.s32 %s16, 1
        // Predicated region
        $region13: #{tpu_custom_call.1} parent=11 // pred_check
          %p150 = pneg %p109
        $region14: #{tpu_custom_call.1} parent=11 // pred_check_branch
          %152 = sbr.rel (%p150) target = $region16
        $region15: #{tpu_custom_call.1} parent=11 // pred_region
          %s154 = ssub.s32 512, 512
          %155 = vsyncadd [#allocation9], %s154
          %s156 = sshll.u32 [#allocation10], 4
          %s157 = int_to_ptr.vmem [resolvable:$true] %s156
          %162 = dma.hbm_to_vmem [thread:$0]  %s2, 512, %s157, [#allocation9], 128, 128, 8
        $region16: #{tpu_custom_call.1} parent=11 // pred_fallthru
          _
      $region12: #{tpu_custom_call.1} parent=5 // pred_fallthru
        _
      %p163 = scmp.lt.s32.totalorder %s16, 2
      // Predicated region
      $region17: #{tpu_custom_call.1} parent=5 // pred_check
        %p164 = pneg %p163
      $region18: #{tpu_custom_call.1} parent=5 // pred_check_branch
        %166 = sbr.rel (%p164) target = $region20
      $region19: #{tpu_custom_call.1} parent=5 // pred_region
        // Predicated region
        $region21: #{tpu_custom_call.1} parent=19 // pred_check
          %p167 = pneg %p52
        $region22: #{tpu_custom_call.1} parent=19 // pred_check_branch
          %169 = sbr.rel (%p167) target = $region24
        $region23: #{tpu_custom_call.1} parent=19 // pred_region
          %s170 = sand.u32 %s42, 1
          %s171 = scalar_lea.sflag [#allocation6], %s170
          %s172 = sand.u32 %s42, 1
          %s173 = smul.addr %s172, 8
          %s174 = scalar_lea.vmem [#allocation5], %s173
          %s175 = ssub.s32 1, %s23
          %s176 = smul.u32 %s24, %s175
          %s178 = ssub.s32 128, 128
          %179 = vsyncadd %s171, %s178
          %s180 = smul.addr %s176, 128
          %s181 = scalar_lea.hbm %s0, %s180
          %s183 = sshll.u32 %s174, 4
          %s184 = int_to_ptr.vmem [resolvable:$true] %s183
          %186 = dma.hbm_to_vmem [thread:$0]  %s181, 128, %s184, %s171
        $region24: #{tpu_custom_call.1} parent=19 // pred_fallthru
          _
        // Predicated region
        $region25: #{tpu_custom_call.1} parent=19 // pred_check
          %p187 = pneg %p82
        $region26: #{tpu_custom_call.1} parent=19 // pred_check_branch
          %189 = sbr.rel (%p187) target = $region28
        $region27: #{tpu_custom_call.1} parent=19 // pred_region
          %s190 = sand.u32 %s16, 1
          %s191 = scalar_lea.sflag [#allocation9], %s190
          %s192 = sand.u32 %s72, 1
          %s193 = smul.addr %s192, 8
          %s194 = scalar_lea.vmem [#allocation8], %s193
          %s195 = ssub.s32 1, %s23
          %s196 = smul.u32 %s24, %s195
          %s198 = ssub.s32 128, 128
          %199 = vsyncadd %s191, %s198
          %s200 = smul.addr %s196, 128
          %s201 = scalar_lea.hbm %s1, %s200
          %s203 = sshll.u32 %s194, 4
          %s204 = int_to_ptr.vmem [resolvable:$true] %s203
          %206 = dma.hbm_to_vmem [thread:$0]  %s201, 128, %s204, %s191
        $region28: #{tpu_custom_call.1} parent=19 // pred_fallthru
          _
      $region20: #{tpu_custom_call.1} parent=5 // pred_fallthru
        _
      %p207 = scmp.le.s32.totalorder 1, %s16
      %p208 = scmp.lt.s32.totalorder %s16, 3
      %p209 = pnand %p207, %p208
      %p210 = pneg %p209
      // Predicated region
      $region29: #{tpu_custom_call.1} parent=5 // pred_check
        _
      $region30: #{tpu_custom_call.1} parent=5 // pred_check_branch
        %212 = sbr.rel (%p209) target = $region32
      $region31: #{tpu_custom_call.1} parent=5 // pred_region
        %s213 = ssub.s32 %s16, 1
        %s214 = sand.u32 %s45, 1
        %s215 = scalar_lea.sflag [#allocation6], %s214
        %s216 = sand.u32 %s45, 1
        %s217 = smul.addr %s216, 8
        %s218 = scalar_lea.vmem [#allocation5], %s217
        // Predicated region
        $region33: #{tpu_custom_call.1} parent=31 // pred_check
          %p219 = pneg %p58
        $region34: #{tpu_custom_call.1} parent=31 // pred_check_branch
          %221 = sbr.rel (%p219) target = $region36
        $region35: #{tpu_custom_call.1} parent=31 // pred_region
          %222 = dma.done %s215, 128
        $region36: #{tpu_custom_call.1} parent=31 // pred_fallthru
          _
        %s223 = sand.u32 %s21, 1
        %s224 = scalar_lea.sflag [#allocation9], %s223
        %s225 = sand.u32 %s75, 1
        %s226 = smul.addr %s225, 8
        %s227 = scalar_lea.vmem [#allocation8], %s226
        // Predicated region
        $region37: #{tpu_custom_call.1} parent=31 // pred_check
          %p228 = pneg %p88
        $region38: #{tpu_custom_call.1} parent=31 // pred_check_branch
          %230 = sbr.rel (%p228) target = $region40
        $region39: #{tpu_custom_call.1} parent=31 // pred_region
          %231 = dma.done %s224, 128
        $region40: #{tpu_custom_call.1} parent=31 // pred_fallthru
          _
        // Predicated region
        $region41: #{tpu_custom_call.1} parent=31 // pred_check
          %p232 = pneg %p109
        $region42: #{tpu_custom_call.1} parent=31 // pred_check_branch
          %234 = sbr.rel (%p232) target = $region44
        $region43: #{tpu_custom_call.1} parent=31 // pred_region
          %235 = dma.done [#allocation9], 512
        $region44: #{tpu_custom_call.1} parent=31 // pred_fallthru
          _
        %s236 = sand.u32 %s45, 1
        %s237 = scalar_lea.sflag [#allocation6], %s236
        %s238 = sand.u32 %s45, 1
        %s239 = smul.addr %s238, 8
        %s240 = scalar_lea.vmem [#allocation5], %s239
        %p241 = pneg %p58
        %p242 = pneg %p55
        %s243 = sand.u32 %s21, 1
        %s244 = scalar_lea.sflag [#allocation9], %s243
        %s245 = sand.u32 %s75, 1
        %s246 = smul.addr %s245, 8
        %s247 = scalar_lea.vmem [#allocation8], %s246
        %p248 = pneg %p88
        %p249 = pneg %p85
        %p250 = pneg %p109
        %p251 = pneg %p106
        %p252 = pneg %p135
        %p253 = pneg %p132
        %s254 = ssub.s32 1, %s25
        %s255 = smul.u32 %s26, %s254
        %s256 = ssub.s32 1, %s25
        %s257 = smul.u32 %s26, %s256
        %p258 = scmp.eq.s32.totalorder %s25, 0
        %p259 = scmp.eq.s32.totalorder %s26, 0
        %p260 = pnand %p258, %p259
        %p261 = pneg %p260
        // Predicated region
        $region45: #{tpu_custom_call.1} parent=31 // pred_check
          _
        $region46: #{tpu_custom_call.1} parent=31 // pred_check_branch
          %263 = sbr.rel (%p260) target = $region48
        $region47: #{tpu_custom_call.1} parent=31 // pred_region
          %vm264 = vcmask 0
          %265 = vst.msk [vmem:[#allocation2] sm:$0x1] %vm264, -inf
          %266 = vst.msk [vmem:[#allocation3] sm:$0x1] %vm264, 0.0
        $region48: #{tpu_custom_call.1} parent=31 // pred_fallthru
          _
        // Predicated region
        $region49: #{tpu_custom_call.1} parent=31 // pred_check
          %p267 = pneg %p258
        $region50: #{tpu_custom_call.1} parent=31 // pred_check_branch
          %269 = sbr.rel (%p267) target = $region52
        $region51: #{tpu_custom_call.1} parent=31 // pred_region
          %v270 = vld [vmem:[%s218] sm:$0xff]
          %v271 = vld [vmem:[%s227] sm:$0xff]
          %v272 = vld [vmem:[#allocation10] sm:$0xff]
          %v273 = vld [vmem:[#allocation10 + $0x8] sm:$0xff]
          %v274 = vld [vmem:[#allocation10 + $0x10] sm:$0xff]
          %v275 = vld [vmem:[#allocation10 + $0x18] sm:$0xff]
          %vm276 = vcmask 261120
          %v278 = vsel %vm276, %v271, 0
          %v281 = vsel %vm276, %v272, 0
          %v284 = vsel %vm276, %v273, 0
          %v287 = vsel %vm276, %v274, 0
          %v290 = vsel %vm276, %v275, 0
          %292 = vmatprep.subr.mxu0 0.0
          %293 = vmatpush1.xpose.msra.mxu0 %v281
          %294 = vmatprep.subr.mxu0 0.0
          %295 = vmatpush1.xpose.msra.mxu0 %v284
          %296 = vmatprep.subr.mxu0 0.0
          %297 = vmatpush1.xpose.msra.mxu0 %v287
          %298 = vmatprep.subr.mxu0 0.0
          %299 = vmatpush1.xpose.msra.mxu0 %v290
          %300 = vmatprep.subr.mxu0 0.0
          %301 = vmatpush1.xpose.msra.mxu0 0.0
          %302 = vmatprep.subr.mxu0 0.0
          %303 = vmatpush1.xpose.msra.mxu0 0.0
          %304 = vmatprep.subr.mxu0 0.0
          %305 = vmatpush1.xpose.msra.mxu0 0.0
          %306 = vmatprep.subr.mxu0 0.0
          %307 = vmatpush1.xpose.msra.mxu0 0.0
          %308 = vmatprep.subr.mxu0 0.0
          %309 = vmatpush1.xpose.msra.mxu0 0.0
          %310 = vmatprep.subr.mxu0 0.0
          %311 = vmatpush1.xpose.msra.mxu0 0.0
          %312 = vmatprep.subr.mxu0 0.0
          %313 = vmatpush1.xpose.msra.mxu0 0.0
          %314 = vmatprep.subr.mxu0 0.0
          %315 = vmatpush1.xpose.msra.mxu0 0.0
          %316 = vmatprep.subr.mxu0 0.0
          %317 = vmatpush1.xpose.msra.mxu0 0.0
          %318 = vmatprep.subr.mxu0 0.0
          %319 = vmatpush1.xpose.msra.mxu0 0.0
          %320 = vmatprep.subr.mxu0 0.0
          %321 = vmatpush1.xpose.msra.mxu0 0.0
          %322 = vmatprep.subr.mxu0 0.0
          %323 = vmatpush1.xpose.msra.mxu0 0.0
          %324 = vmatprep.subr.mxu0 0.0
          %325 = vmatpush1.xpose.msra.mxu0 0.0
          %326 = vmatprep.subr.mxu0 0.0
          %327 = vmatpush1.xpose.msra.mxu0 0.0
          %328 = vmatprep.subr.mxu0 0.0
          %329 = vmatpush1.xpose.msra.mxu0 0.0
          %330 = vmatprep.subr.mxu0 0.0
          %331 = vmatpush1.xpose.msra.mxu0 0.0
          %332 = vmatprep.subr.mxu0 0.0
          %333 = vmatpush1.xpose.msra.mxu0 0.0
          %334 = vmatprep.subr.mxu0 0.0
          %335 = vmatpush1.xpose.msra.mxu0 0.0
          %336 = vmatprep.subr.mxu0 0.0
          %337 = vmatpush1.xpose.msra.mxu0 0.0
          %338 = vmatprep.subr.mxu0 0.0
          %339 = vmatpush1.xpose.msra.mxu0 0.0
          %340 = vmatprep.subr.mxu0 0.0
          %341 = vmatpush1.xpose.msra.mxu0 0.0
          %342 = vmatprep.subr.mxu0 0.0
          %343 = vmatpush1.xpose.msra.mxu0 0.0
          %344 = vmatprep.subr.mxu0 0.0
          %345 = vmatpush1.xpose.msra.mxu0 0.0
          %346 = vmatprep.subr.mxu0 0.0
          %347 = vmatpush1.xpose.msra.mxu0 0.0
          %348 = vmatprep.subr.mxu0 0.0
          %349 = vmatpush1.xpose.msra.mxu0 0.0
          %350 = vmatprep.subr.mxu0 0.0
          %351 = vmatpush1.xpose.msra.mxu0 0.0
          %352 = vmatprep.subr.mxu0 0.0
          %353 = vmatpush1.xpose.msra.mxu0 0.0
          %354 = vmatprep.subr.mxu0 0.0
          %355 = vmatpush1.xpose.msra.mxu0 0.0
          %356 = vmatprep.mubr.f32.mxu0 0.0
          %357 = vmatmul.mubr.f32.gmra.mrb[0].mxu0 %v278
          %v358 = vpop.f32.mrb[0].mxu0
          %v359 = vadd.f32 0.0, %v358
          %v360 = vpop.f32.mrb[0].mxu0
          %361 = vdwg.mxu0
          %v362 = vmul.f32 %v270, %v359
          %v364 = vsel %vm276, 1.0, 0
          %v367 = vsel %vm276, %v362, 0
          %369 = vmatprep.subr.mxu0 0.0
          %370 = vmatpush1.xpose.msra.mxu0 %v367
          %371 = vmatprep.subr.mxu0 0.0
          %372 = vmatpush1.xpose.msra.mxu0 0.0
          %373 = vmatprep.subr.mxu0 0.0
          %374 = vmatpush1.xpose.msra.mxu0 0.0
          %375 = vmatprep.subr.mxu0 0.0
          %376 = vmatpush1.xpose.msra.mxu0 0.0
          %377 = vmatprep.subr.mxu0 0.0
          %378 = vmatpush1.xpose.msra.mxu0 0.0
          %379 = vmatprep.subr.mxu0 0.0
          %380 = vmatpush1.xpose.msra.mxu0 0.0
          %381 = vmatprep.subr.mxu0 0.0
          %382 = vmatpush1.xpose.msra.mxu0 0.0
          %383 = vmatprep.subr.mxu0 0.0
          %384 = vmatpush1.xpose.msra.mxu0 0.0
          %385 = vmatprep.subr.mxu0 0.0
          %386 = vmatpush1.xpose.msra.mxu0 0.0
          %387 = vmatprep.subr.mxu0 0.0
          %388 = vmatpush1.xpose.msra.mxu0 0.0
          %389 = vmatprep.subr.mxu0 0.0
          %390 = vmatpush1.xpose.msra.mxu0 0.0
          %391 = vmatprep.subr.mxu0 0.0
          %392 = vmatpush1.xpose.msra.mxu0 0.0
          %393 = vmatprep.subr.mxu0 0.0
          %394 = vmatpush1.xpose.msra.mxu0 0.0
          %395 = vmatprep.subr.mxu0 0.0
          %396 = vmatpush1.xpose.msra.mxu0 0.0
          %397 = vmatprep.subr.mxu0 0.0
          %398 = vmatpush1.xpose.msra.mxu0 0.0
          %399 = vmatprep.subr.mxu0 0.0
          %400 = vmatpush1.xpose.msra.mxu0 0.0
          %401 = vmatprep.subr.mxu0 0.0
          %402 = vmatpush1.xpose.msra.mxu0 0.0
          %403 = vmatprep.subr.mxu0 0.0
          %404 = vmatpush1.xpose.msra.mxu0 0.0
          %405 = vmatprep.subr.mxu0 0.0
          %406 = vmatpush1.xpose.msra.mxu0 0.0
          %407 = vmatprep.subr.mxu0 0.0
          %408 = vmatpush1.xpose.msra.mxu0 0.0
          %409 = vmatprep.subr.mxu0 0.0
          %410 = vmatpush1.xpose.msra.mxu0 0.0
          %411 = vmatprep.subr.mxu0 0.0
          %412 = vmatpush1.xpose.msra.mxu0 0.0
          %413 = vmatprep.subr.mxu0 0.0
          %414 = vmatpush1.xpose.msra.mxu0 0.0
          %415 = vmatprep.subr.mxu0 0.0
          %416 = vmatpush1.xpose.msra.mxu0 0.0
          %417 = vmatprep.subr.mxu0 0.0
          %418 = vmatpush1.xpose.msra.mxu0 0.0
          %419 = vmatprep.subr.mxu0 0.0
          %420 = vmatpush1.xpose.msra.mxu0 0.0
          %421 = vmatprep.subr.mxu0 0.0
          %422 = vmatpush1.xpose.msra.mxu0 0.0
          %423 = vmatprep.subr.mxu0 0.0
          %424 = vmatpush1.xpose.msra.mxu0 0.0
          %425 = vmatprep.subr.mxu0 0.0
          %426 = vmatpush1.xpose.msra.mxu0 0.0
          %427 = vmatprep.subr.mxu0 0.0
          %428 = vmatpush1.xpose.msra.mxu0 0.0
          %429 = vmatprep.subr.mxu0 0.0
          %430 = vmatpush1.xpose.msra.mxu0 0.0
          %431 = vmatprep.subr.mxu0 0.0
          %432 = vmatpush1.xpose.msra.mxu0 0.0
          %433 = vmatprep.mubr.f32.mxu0 0.0
          %434 = vmatmul.mubr.f32.gmra.mrb[0].mxu0 %v364
          %v435 = vpop.f32.mrb[0].mxu0
          %v436 = vadd.f32 0.0, %v435
          %v437 = vpop.f32.mrb[0].mxu0
          %438 = vdwg.mxu0
          %s439 = scalar_lea.vmem [#allocation4], %s26
          %vm440 = vcmask 57344
          %441 = vst.msk [vmem:[%s439] sm:$0x1] %vm440, %v436
          %v442 = vld [vmem:[#allocation2] sm:$0x1]
          %v443 = vsel %vm440, %v436, -inf
          %444 = vmax.xlane.f32.xlu0 %v443
          %v445 = vpop.xlane.xlu0 %444
          %v446 = vmax.f32 %v442, %v445
          %v447 = vld [vmem:[#allocation3] sm:$0x1]
          %v448 = vsub.f32 %v442, %v446
          %v449 = vmul.f32 %v448, 1.442695
          %v450 = vpow.pop %v449
          %v451 = vmul.f32 %v447, %v450
          %453 = vset.pattern.permute.xlu0 0
          %454 = vperm.xlu0 %453, %v446
          %v455 = vpop.permute.xlu0 %454
          %v457 = vlaneseq
          %v458 = vshrl.u32 %v457, 7
          %v459 = vsub.s32 0, %v458
          %v460 = vrot.slane %v455, %v459
          %v461 = vsub.f32 %v436, %v460
          %v462 = vmul.f32 %v461, 1.442695
          %v463 = vpow.pop %v462
          %v464 = vsel %vm440, %v463, 0.0
          %465 = vadd.xlane.f32.xlu0 %v464
          %v466 = vpop.xlane.xlu0 %465
          %v467 = vadd.f32 %v451, %v466
          %vm468 = vcmask 0
          %469 = vst.msk [vmem:[#allocation3] sm:$0x1] %vm468, %v467
          %470 = vst.msk [vmem:[#allocation2] sm:$0x1] %vm468, %v446
        $region52: #{tpu_custom_call.1} parent=31 // pred_fallthru
          _
        %p471 = scmp.eq.s32.totalorder %s25, 1
        // Predicated region
        $region53: #{tpu_custom_call.1} parent=31 // pred_check
          %p472 = pneg %p471
        $region54: #{tpu_custom_call.1} parent=31 // pred_check_branch
          %474 = sbr.rel (%p472) target = $region56
        $region55: #{tpu_custom_call.1} parent=31 // pred_region
          %s475 = scalar_lea.vmem [#allocation4], %s26
          %v476 = vld [vmem:[%s475] sm:$0x1]
          %v477 = vld [vmem:[#allocation2] sm:$0x1]
          %479 = vset.pattern.permute.xlu0 0
          %480 = vperm.xlu0 %479, %v477
          %v481 = vpop.permute.xlu0 %480
          %v483 = vlaneseq
          %v484 = vshrl.u32 %v483, 7
          %v485 = vsub.s32 0, %v484
          %v486 = vrot.slane %v481, %v485
          %v487 = vsub.f32 %v476, %v486
          %v488 = vmul.f32 %v487, 1.442695
          %v489 = vpow.pop %v488
          %v490 = vld [vmem:[#allocation3] sm:$0x1]
          %v491 = vrcp.pop %v490
          %493 = vset.pattern.permute.xlu0 0
          %494 = vperm.xlu0 %493, %v491
          %v495 = vpop.permute.xlu0 %494
          %v497 = vlaneseq
          %v498 = vshrl.u32 %v497, 7
          %v499 = vsub.s32 0, %v498
          %v500 = vrot.slane %v495, %v499
          %v501 = vmul.f32 %v489, %v500
          %vm502 = vcmask 57344
          %503 = vst.msk [vmem:[#allocation11] sm:$0x1] %vm502, %v501
        $region56: #{tpu_custom_call.1} parent=31 // pred_fallthru
          _
        // Predicated region
        $region57: #{tpu_custom_call.1} parent=31 // pred_check
          %p504 = pneg %p132
        $region58: #{tpu_custom_call.1} parent=31 // pred_check_branch
          %506 = sbr.rel (%p504) target = $region60
        $region59: #{tpu_custom_call.1} parent=31 // pred_region
          %s508 = ssub.s32 16, 16
          %509 = vsyncadd [#allocation7], %s508
          %s510 = smul.addr %s26, 16
          %s511 = scalar_lea.hbm %s3, %s510
          %s513 = sshll.u32 [#allocation11], 4
          %s514 = int_to_ptr.vmem [resolvable:$true] %s513
          %516 = dma.vmem_to_hbm [thread:$0]  %s514, 16, %s511, [#allocation7]
        $region60: #{tpu_custom_call.1} parent=31 // pred_fallthru
          _
        // Predicated region
        $region61: #{tpu_custom_call.1} parent=31 // pred_check
          %p517 = pneg %p132
        $region62: #{tpu_custom_call.1} parent=31 // pred_check_branch
          %519 = sbr.rel (%p517) target = $region64
        $region63: #{tpu_custom_call.1} parent=31 // pred_region
          %520 = dma.done [#allocation7], 16
        $region64: #{tpu_custom_call.1} parent=31 // pred_fallthru
          _
      $region32: #{tpu_custom_call.1} parent=5 // pred_fallthru
        _
      %p521 = scmp.le.s32.totalorder 2, %s16
      // Predicated region
      $region65: #{tpu_custom_call.1} parent=5 // pred_check
        %p522 = pneg %p521
      $region66: #{tpu_custom_call.1} parent=5 // pred_check_branch
        %524 = sbr.rel (%p522) target = $region68
      $region67: #{tpu_custom_call.1} parent=5 // pred_region
        %s525 = ssub.s32 %s16, 2
      $region68: #{tpu_custom_call.1} parent=5 // pred_fallthru
        _
    $region6: #{tpu_custom_call.1} parent=1 // loop_footer
      %s20 = sadd.s32 1, %s16
    $region7: #{tpu_custom_call.1} parent=1 // loop_footer_branch
      %15 = sbr.rel target = $region3
    $region8: #{tpu_custom_call.1} parent=1 // loop_exit
      _
    %526 = vsyncpa [#allocation6], 1
    %s527 = scalar_lea.sflag [#allocation6], 1
    %528 = vsyncpa %s527, 1
    %529 = vsyncpa [#allocation9], 1
    %s530 = scalar_lea.sflag [#allocation9], 1
    %531 = vsyncpa %s530, 1
    %532 = vsyncpa [#allocation7], 1
    %s533 = scalar_lea.sflag [#allocation7], 1
    %534 = vsyncpa %s533, 1

</llo_original>
